<compile_context>
chip_gen: v5e
topology: v5e:2x2
jax: 0.10.0
libtpu: 0.0.40
codegen_flags: <defaults>
</compile_context>

<pallas_src>
import math
from functools import partial

import numpy as np
import jax
import jax.numpy as jnp
from jax.experimental import pallas as pl
from jax.experimental.pallas import tpu as pltpu


# ----------------------------- irreps bookkeeping ----------------------------
def rs_convention(Rs):
    out = []
    for r in Rs:
        if isinstance(r, int):
            mul, l, p = 1, r, 0
        elif len(r) == 2:
            (mul, l), p = r, 0
        else:
            mul, l, p = r
        out.append((int(mul), int(l), int(p)))
    return out


def rs_dim(Rs):
    return sum(mul * (2 * l + 1) for mul, l, _ in Rs)


# -------------------- real-basis Wigner 3j tensors (small l) -----------------
def wigner_3j(l1, l2, l3):
    key = (l1, l2, l3)
    if key == (0, 0, 0):
        return np.ones((1, 1, 1), np.float64)
    if key == (1, 1, 0):
        return np.eye(3)[:, :, None] / math.sqrt(3.0)
    if key == (0, 1, 1):
        return np.eye(3)[None, :, :] / math.sqrt(3.0)
    if key == (1, 0, 1):
        return np.eye(3)[:, None, :] / math.sqrt(3.0)
    if key == (1, 1, 1):
        eps = np.zeros((3, 3, 3), np.float64)
        for i, j, k in [(0, 1, 2), (1, 2, 0), (2, 0, 1)]:
            eps[i, j, k] = 1.0
            eps[i, k, j] = -1.0
        return eps / math.sqrt(6.0)
    # TODO(synk): higher-l Wigner 3j not tabulated in this synthetic script.
    raise NotImplementedError(f"wigner_3j{key} not tabulated")


# ---------------- parameter setup: fold weights into bilinear map ------------
def num_weights(Rs_in1, Rs_in2, Rs_out, instr):
    Rs_in1, Rs_in2, Rs_out = map(rs_convention, (Rs_in1, Rs_in2, Rs_out))
    n = 0
    for i1, i2, io, mode in sorted(instr):
        mul1 = Rs_in1[i1][0]
        mul2 = Rs_in2[i2][0]
        mulo = Rs_out[io][0]
        n += {
            "uvw": mul1 * mul2 * mulo,
            "uvu": mul1 * mul2,
            "uvv": mul1 * mul2,
            "uuw": mul1 * mulo,
            "uuu": mul1,
            "uvuv": mul1 * mul2,
        }[mode]
    return n


def build_bilinear_matrix(Rs_in1, Rs_in2, Rs_out, instr, weight,
                          normalization="component"):
    """Return numpy M[D1, D2, DOUT] so that out = einsum('za,zb,abo->zo', x1, x2, M)."""
    Rs_in1, Rs_in2, Rs_out = map(rs_convention, (Rs_in1, Rs_in2, Rs_out))
    weight = np.asarray(weight, np.float64)
    D1, D2, DOUT = rs_dim(Rs_in1), rs_dim(Rs_in2), rs_dim(Rs_out)
    M = np.zeros((D1, D2, DOUT), np.float64)
    count = np.zeros((DOUT,), np.float64)
    index_w = 0
    for i1, i2, io, mode in sorted(instr):
        mul1, l1, p1 = Rs_in1[i1]
        mul2, l2, p2 = Rs_in2[i2]
        mulo, lo, po = Rs_out[io]
        assert p1 * p2 == po
        assert abs(l1 - l2) <= lo <= l1 + l2
        dim1 = mul1 * (2 * l1 + 1)
        dim2 = mul2 * (2 * l2 + 1)
        dimo = mulo * (2 * lo + 1)
        idx1 = rs_dim(Rs_in1[:i1])
        idx2 = rs_dim(Rs_in2[:i2])
        idxo = rs_dim(Rs_out[:io])
        if dim1 == 0 or dim2 == 0 or dimo == 0:
            continue
        C = wigner_3j(l1, l2, lo)
        if normalization == "component":
            C = C * math.sqrt(2 * lo + 1)
        elif normalization == "norm":
            C = C * math.sqrt((2 * l1 + 1) * (2 * l2 + 1))

        if mode == "uvw":
            dim_w = mul1 * mul2 * mulo
            Wuvw = weight[index_w:index_w + dim_w].reshape(mul1, mul2, mulo)
            count[idxo:idxo + dimo] += mul1 * mul2
        elif mode == "uvu":
            assert mul1 == mulo
            dim_w = mul1 * mul2
            W = weight[index_w:index_w + dim_w].reshape(mul1, mul2)
            Wuvw = np.einsum("uv,uw->uvw", W, np.eye(mul1))
            count[idxo:idxo + dimo] += mul2
        elif mode == "uvv":
            assert mul2 == mulo
            dim_w = mul1 * mul2
            W = weight[index_w:index_w + dim_w].reshape(mul1, mul2)
            Wuvw = np.einsum("uv,vw->uvw", W, np.eye(mul2))
            count[idxo:idxo + dimo] += mul1
        elif mode == "uuw":
            assert mul1 == mul2
            dim_w = mul1 * mulo
            W = weight[index_w:index_w + dim_w].reshape(mul1, mulo)
            Wuvw = np.einsum("uw,uv->uvw", W, np.eye(mul1))
            count[idxo:idxo + dimo] += mul1
        elif mode == "uuu":
            assert mul1 == mul2 == mulo
            dim_w = mul1
            W = weight[index_w:index_w + dim_w]
            Wuvw = np.zeros((mul1, mul1, mul1))
            Wuvw[np.arange(mul1), np.arange(mul1), np.arange(mul1)] = W
            count[idxo:idxo + dimo] += 1
        elif mode == "uvuv":
            assert mul1 * mul2 == mulo
            dim_w = mul1 * mul2
            W = weight[index_w:index_w + dim_w].reshape(mul1, mul2)
            Wuvw = np.zeros((mul1, mul2, mulo))
            for u in range(mul1):
                for v in range(mul2):
                    Wuvw[u, v, u * mul2 + v] = W[u, v]
            count[idxo:idxo + dimo] += 1
        else:
            raise ValueError(mode)

        block = np.einsum("uvw,ijk->uivjwk", Wuvw, C).reshape(dim1, dim2, dimo)
        M[idx1:idx1 + dim1, idx2:idx2 + dim2, idxo:idxo + dimo] += block
        index_w += dim_w

    # component-count normalization (same as the generated `out.div_(c**0.5)`)
    scale = np.where(count > 1.0, 1.0 / np.sqrt(np.maximum(count, 1.0)), 1.0)
    M = M * scale[None, None, :]
    return M  # numpy float64, shape (D1, D2, DOUT)


def flatten_bilinear_matrix(M_np):
    """(D1, D2, DOUT) -> channels-first (DOUT, D1*D2), done once in numpy."""
    D1, D2, DOUT = M_np.shape
    return jnp.asarray(np.transpose(M_np, (2, 0, 1)).reshape(DOUT, D1 * D2),
                       jnp.float32)


# ----------------------------- hardware heuristics ----------------------------
_VMEM_LIMIT_BYTES = 48 * 1024 * 1024   # < 64 MiB v7x physical; > all default scoped limits


def _round_up(x, m):
    return ((x + m - 1) // m) * m


def _num_tensorcores():
    """Best-effort TensorCore-per-chip count (v7x=2, v5e/v6e=1)."""
    try:
        info = pltpu.get_tpu_info()
        for name in ("num_cores", "tensorcore_count", "num_tensorcores",
                     "cores_per_chip"):
            v = getattr(info, name, None)
            if v:
                return max(1, int(v))
    except Exception:
        pass
    try:
        return max(1, int(getattr(jax.devices()[0], "num_cores", 1)))
    except Exception:
        return 1


def _vmem_capacity_bytes():
    """Best-effort physical VMEM size (v7x=64 MiB, v5e/v6e=128 MiB)."""
    try:
        v = getattr(pltpu.get_tpu_info(), "vmem_capacity_bytes", None)
        if v:
            return int(v)
    except Exception:
        pass
    return 128 << 20


def _choose_z_tile(z, target, d1, d2, dout, k_chunk_rows,
                   in_bytes, out_bytes, num_cores, vmem_cap):
    """z (lane-axis) tile: multiple of 128, VMEM-capped, >= num_cores grid steps
    only on multi-TensorCore chips."""
    if z <= 256:
        return z                                    # single full-extent tile
    budget = min(vmem_cap // 2, _VMEM_LIMIT_BYTES - (4 << 20))
    per_col = (2 * (d1 + d2) * in_bytes             # double-buffered input tiles
               + 2 * dout * out_bytes               # double-buffered output tiles
               + 2 * k_chunk_rows * d2 * in_bytes   # live x12 chunk (+ overlap)
               + 2 * dout * 4)                      # f32 accumulator value
    tb_cap = max(128, (budget // max(per_col, 1)) // 128 * 128)
    tb = min(target, _round_up(z, 128), tb_cap)
    if num_cores >= 2:
        per_core = max(128, _round_up(pl.cdiv(z, num_cores), 128))
        tb = min(tb, per_core)
    return max(128, (tb // 128) * 128)


# --------------------------------- Pallas kernel -----------------------------
def _make_tp_kernel(d1, d2, dout, k_chunk_rows, acc_dtype=jnp.float32):
    """Kernel: o(DOUT, TB) = sum_c M2T[:, c] @ x12_c, chunked over d1."""
    n_chunks = -(-d1 // k_chunk_rows)

    def kernel(x1_ref, x2_ref, m_ref, o_ref):
        # x1_ref: (d1, TB)  x2_ref: (d2, TB)  m_ref: (dout, d1*d2)  o_ref: (dout, TB)
        x2t = x2_ref[...]
        acc = None
        for c in range(n_chunks):                       # static, small (d1/k rows)
            r0 = c * k_chunk_rows
            rows = min(k_chunk_rows, d1 - r0)
            x1c = x1_ref[r0:r0 + rows, :]               # (rows, TB) static slice
            tb = x1c.shape[-1]
            # Outer product with z on the lane axis: only sublane broadcasts,
            # lanes untouched -> cheap VPU build; bounded (rows*d2, TB) live set.
            x12 = (x1c[:, None, :] * x2t[None, :, :]).reshape(rows * d2, tb)
            mc = m_ref[:, r0 * d2:(r0 + rows) * d2]     # (dout, rows*d2)
            # TODO(synk): if profiling shows Mosaic latching x12 (not M) as the
            # MXU stationary operand, drive the MXU explicitly via
            # pltpu.matmul_push_rhs so the constant M is pushed once per tile.
            part = jnp.dot(mc, x12, preferred_element_type=acc_dtype)
            acc = part if acc is None else acc + part
        o_ref[...] = acc.astype(o_ref.dtype)

    return kernel


# --------------------------- channels-first fast path -------------------------
def weighted_tensor_product_cf(x1_t, x2_t, m2t, *, tile_rows=8192,
                               out_dtype=jnp.float32, k_chunk_rows=8):
    """Channels-first core: x1_t (D1, Z), x2_t (D2, Z) -> out_t (DOUT, Z).

    Callers that can keep activations channels-first should use this entry
    point directly and skip all wrapper-side layout passes."""
    d1, z = x1_t.shape
    d2, z2 = x2_t.shape
    assert z == z2
    dout, dk = m2t.shape
    assert dk == d1 * d2
    cd = x1_t.dtype
    m = m2t.astype(cd)
    k_chunk_rows = max(1, min(int(k_chunk_rows), d1))

    in_itemsize = jnp.dtype(cd).itemsize
    out_itemsize = jnp.dtype(out_dtype).itemsize
    tb = _choose_z_tile(z, int(tile_rows), d1, d2, dout, k_chunk_rows,
                        in_bytes=in_itemsize, out_bytes=out_itemsize,
                        num_cores=_num_tensorcores(),
                        vmem_cap=_vmem_capacity_bytes())
    grid = (pl.cdiv(z, tb),)

    cost = pl.CostEstimate(
        flops=2 * dout * d1 * d2 * z + d1 * d2 * z,
        transcendentals=0,
        bytes_accessed=((d1 + d2) * z * in_itemsize
                        + dout * z * out_itemsize
                        + dout * dk * in_itemsize))

    kernel = _make_tp_kernel(d1, d2, dout, k_chunk_rows)
    return pl.pallas_call(
        kernel,
        out_shape=jax.ShapeDtypeStruct((dout, z), out_dtype),
        grid=grid,
        in_specs=[
            pl.BlockSpec((d1, tb), lambda i: (0, i)),
            pl.BlockSpec((d2, tb), lambda i: (0, i)),
            pl.BlockSpec((dout, dk), lambda i: (0, 0)),   # VMEM-resident constant M
        ],
        out_specs=pl.BlockSpec((dout, tb), lambda i: (0, i)),
        compiler_params=pltpu.CompilerParams(
            dimension_semantics=("parallel",),
            vmem_limit_bytes=_VMEM_LIMIT_BYTES),
        cost_estimate=cost,
    )(x1_t, x2_t, m)


# ------------------------------- [..., channel] API ---------------------------
def weighted_tensor_product(features_1, features_2, m2t, *, tile_rows=8192,
                            compute_dtype=jnp.bfloat16, out_dtype=jnp.float32,
                            k_chunk_rows=8):
    """out[..., o] = sum_{a,b} x1[..., a] * x2[..., b] * M[a, b, o],
    with M supplied pre-flattened as m2t[o, a*D2 + b].

    compute_dtype=bfloat16 (default) runs the MXU natively on v6e/v7x with f32
    accumulation; pass jnp.float32 for strict-accuracy validation."""
    *size, d1 = features_1.shape
    *size2, d2 = features_2.shape
    assert size == size2
    dout, dk = m2t.shape
    assert dk == d1 * d2
    z = int(np.prod(size)) if size else 1
    if z == 0:
        return jnp.zeros((*size, dout), out_dtype)

    # Layout plumbing only: one fused cast+transpose per input under jit (no pad,
    # no extra passes).  Use weighted_tensor_product_cf to avoid it entirely.
    x1_t = features_1.reshape(z, d1).astype(compute_dtype).T   # (d1, z)
    x2_t = features_2.reshape(z, d2).astype(compute_dtype).T   # (d2, z)

    out_t = weighted_tensor_product_cf(
        x1_t, x2_t, m2t, tile_rows=tile_rows, out_dtype=out_dtype,
        k_chunk_rows=k_chunk_rows)
    return out_t.T.reshape(*size, dout)


# ------------------------------------- main -----------------------------------
if __name__ == "__main__":
    # Config: 4x(l=0) + 4x(l=1) for both inputs and the output, all even parity.
    Rs_in1 = [(4, 0, 1), (4, 1, 1)]
    Rs_in2 = [(4, 0, 1), (4, 1, 1)]
    Rs_out = [(4, 0, 1), (4, 1, 1)]
    instr = [
        (0, 0, 0, "uvw"),
        (0, 1, 1, "uvw"),
        (1, 0, 1, "uvw"),
        (1, 1, 0, "uvw"),
        (1, 1, 1, "uvw"),
    ]

    d1 = rs_dim(rs_convention(Rs_in1))   # 16
    d2 = rs_dim(rs_convention(Rs_in2))   # 16
    do = rs_dim(rs_convention(Rs_out))   # 16
    nweight = num_weights(Rs_in1, Rs_in2, Rs_out, instr)  # 320

    key = jax.random.PRNGKey(0)
    k1, k2, kw, k3, k4, k5, k6 = jax.random.split(key, 7)
    # features are [..., channel] (batch=2, seq=8)
    features_1 = jax.random.normal(k1, (2, 8, d1), jnp.float32)
    features_2 = jax.random.normal(k2, (2, 8, d2), jnp.float32)
    weight = jax.random.normal(kw, (nweight,), jnp.float32)  # torch.randn(nweight)

    # TODO(synk): per-sample `weight` (shape (batch, nweight)) is not supported;
    # the module's own batch-shared parameter is folded into the constant M.
    M_np = build_bilinear_matrix(Rs_in1, Rs_in2, Rs_out, instr, weight,
                                 normalization="component")
    M3 = jnp.asarray(M_np, jnp.float32)          # for the reference einsum
    M2T = flatten_bilinear_matrix(M_np)          # (DOUT, D1*D2) for the kernel

    def ref_tp(f1, f2):
        lead = f1.shape[:-1]
        return jnp.einsum("za,zb,abo->zo",
                          f1.reshape(-1, d1), f2.reshape(-1, d2), M3,
                          precision=jax.lax.Precision.HIGHEST).reshape(*lead, do)

    tp_bf16 = jax.jit(partial(weighted_tensor_product, m2t=M2T))             # default bf16 MXU path
    tp_f32 = jax.jit(partial(weighted_tensor_product, m2t=M2T,
                             compute_dtype=jnp.float32))                      # strict validation path

    def check(out, ref, strict):
        out = np.asarray(jax.block_until_ready(out))
        ref = np.asarray(ref)
        assert out.shape == ref.shape
        if strict:
            assert np.allclose(out, ref, atol=1e-4, rtol=1e-4)
        else:
            assert np.allclose(out, ref, atol=0.25, rtol=0.05)
            rms_ref = float(np.sqrt(np.mean(ref ** 2))) + 1e-12
            rms_err = float(np.sqrt(np.mean((out - ref) ** 2)))
            assert rms_err < 3e-2 * rms_ref

    # --- check 1: small shapes (single sub-128 full-extent tile) ---
    ref1 = ref_tp(features_1, features_2)
    check(tp_f32(features_1, features_2), ref1, strict=True)
    check(tp_bf16(features_1, features_2), ref1, strict=False)

    # --- check 2: mid-size z with a ragged partial block (no padding used) ---
    f1b = jax.random.normal(k3, (3, 200, d1), jnp.float32)
    f2b = jax.random.normal(k4, (3, 200, d2), jnp.float32)
    ref2 = ref_tp(f1b, f2b)
    check(tp_f32(f1b, f2b), ref2, strict=True)
    check(tp_bf16(f1b, f2b), ref2, strict=False)

    # --- check 3: multi-tile grid at the default 8192-lane tile + ragged tail ---
    f1c = jax.random.normal(k5, (5, 2500, d1), jnp.float32)
    f2c = jax.random.normal(k6, (5, 2500, d2), jnp.float32)
    ref3 = ref_tp(f1c, f2c)
    check(tp_f32(f1c, f2c), ref3, strict=True)
    check(tp_bf16(f1c, f2c), ref3, strict=False)

    print("KERNEL_OK")
</pallas_src>

<mosaic_0001>
module attributes {stable_mosaic.version = 11 : i64} {
  func.func @kernel(%arg0: i32, %arg1: memref<16x16xf32, #tpu.memory_space<vmem>>, %arg2: memref<16x16xf32, #tpu.memory_space<vmem>>, %arg3: memref<16x256xf32, #tpu.memory_space<vmem>>, %arg4: memref<16x16xf32, #tpu.memory_space<vmem>>) attributes {dimension_semantics = [#tpu.dimension_semantics<parallel>], iteration_bounds = array<i64: 1>, scalar_prefetch = 0 : i64, scratch_operands = 0 : i64, tpu.core_type = #tpu.core_type<tc>, window_params = [{transform_indices = @transform_0, window_bounds = array<i64: 16, 16>}, {transform_indices = @transform_1, window_bounds = array<i64: 16, 16>}, {pipeline_mode = #tpu.pipeline_mode<synchronous>, transform_indices = @transform_2, window_bounds = array<i64: 16, 256>}, {transform_indices = @transform_3, window_bounds = array<i64: 16, 16>}]} {
    %c0 = arith.constant 0 : index
    %c0_0 = arith.constant 0 : index
    %0 = vector.load %arg2[%c0, %c0_0] : memref<16x16xf32, #tpu.memory_space<vmem>>, vector<16x16xf32>
    %c0_1 = arith.constant 0 : index
    %c0_2 = arith.constant 0 : index
    %1 = vector.load %arg1[%c0_1, %c0_2] : memref<16x16xf32, #tpu.memory_space<vmem>>, vector<8x16xf32>
    %2 = vector.shape_cast %1 : vector<8x16xf32> to vector<8x1x16xf32>
    %3 = vector.shape_cast %0 : vector<16x16xf32> to vector<1x16x16xf32>
    %4 = vector.broadcast %2 : vector<8x1x16xf32> to vector<8x16x16xf32>
    %5 = vector.broadcast %3 : vector<1x16x16xf32> to vector<8x16x16xf32>
    %6 = arith.mulf %4, %5 : vector<8x16x16xf32>
    %7 = vector.shape_cast %6 : vector<8x16x16xf32> to vector<128x16xf32>
    %c0_3 = arith.constant 0 : index
    %c0_4 = arith.constant 0 : index
    %8 = vector.load %arg3[%c0_3, %c0_4] : memref<16x256xf32, #tpu.memory_space<vmem>>, vector<16x128xf32>
    %cst = arith.constant dense<0.000000e+00> : vector<16x16xf32>
    %9 = tpu.matmul %8, %7, %cst {dimension_numbers = #tpu.dot_dimension_numbers<[1], [0], [0], [1], [0, 0, 1, 1], [], []>} : vector<16x128xf32>, vector<128x16xf32>, vector<16x16xf32> -> vector<16x16xf32>
    %c8 = arith.constant 8 : index
    %c0_5 = arith.constant 0 : index
    %10 = vector.load %arg1[%c8, %c0_5] : memref<16x16xf32, #tpu.memory_space<vmem>>, vector<8x16xf32>
    %11 = vector.shape_cast %10 : vector<8x16xf32> to vector<8x1x16xf32>
    %12 = vector.shape_cast %0 : vector<16x16xf32> to vector<1x16x16xf32>
    %13 = vector.broadcast %11 : vector<8x1x16xf32> to vector<8x16x16xf32>
    %14 = vector.broadcast %12 : vector<1x16x16xf32> to vector<8x16x16xf32>
    %15 = arith.mulf %13, %14 : vector<8x16x16xf32>
    %16 = vector.shape_cast %15 : vector<8x16x16xf32> to vector<128x16xf32>
    %c0_6 = arith.constant 0 : index
    %c128 = arith.constant 128 : index
    %17 = vector.load %arg3[%c0_6, %c128] : memref<16x256xf32, #tpu.memory_space<vmem>>, vector<16x128xf32>
    %cst_7 = arith.constant dense<0.000000e+00> : vector<16x16xf32>
    %18 = tpu.matmul %17, %16, %cst_7 {dimension_numbers = #tpu.dot_dimension_numbers<[1], [0], [0], [1], [0, 0, 1, 1], [], []>} : vector<16x128xf32>, vector<128x16xf32>, vector<16x16xf32> -> vector<16x16xf32>
    %19 = arith.addf %9, %18 : vector<16x16xf32>
    %c0_8 = arith.constant 0 : index
    %c0_9 = arith.constant 0 : index
    %20 = vector.load %arg4[%c0_8, %c0_9] : memref<16x16xf32, #tpu.memory_space<vmem>>, vector<16x16xf32>
    tpu.vector_store %arg4[%c0_8, %c0_9], %19 {strides = array<i32>} : memref<16x16xf32, #tpu.memory_space<vmem>>, vector<16x16xf32>,
    return
  }
  func.func @transform_0(%arg0: i32) -> (i32, i32) {
    %c0_i32 = arith.constant 0 : i32
    %c0_i32_0 = arith.constant 0 : i32
    return %c0_i32, %arg0 : i32, i32
  }
  func.func @transform_1(%arg0: i32) -> (i32, i32) {
    %c0_i32 = arith.constant 0 : i32
    %c0_i32_0 = arith.constant 0 : i32
    return %c0_i32, %arg0 : i32, i32
  }
  func.func @transform_2(%arg0: i32) -> (i32, i32) {
    %c0_i32 = arith.constant 0 : i32
    %c0_i32_0 = arith.constant 0 : i32
    %c0_i32_1 = arith.constant 0 : i32
    return %c0_i32, %c0_i32_0 : i32, i32
  }
  func.func @transform_3(%arg0: i32) -> (i32, i32) {
    %c0_i32 = arith.constant 0 : i32
    %c0_i32_0 = arith.constant 0 : i32
    return %c0_i32, %arg0 : i32, i32
  }
}

</mosaic_0001>

<llo_original>
// kernel: weighted_tensor_product.1
$region0: #{weighted_tensor_product.1}
  #allocation0 [shape = 'u32[]', space=smem, size = 0x4, offset = 0x4, fixed_abs, tag = 'smem constant byte address 0x4 - core index']
  #allocation1 [shape = 'u32[72,128]{1,0:T(1,128)}', space=vmem, size = 0x9000, scoped, tag = 'internal scratch']
  %s0 = inlined_call_operand.vmem [shape: f32[16,16], index: 0, kind: input, shape index: {}]
  %s1 = inlined_call_operand.vmem [shape: f32[16,16], index: 1, kind: input, shape index: {}]
  %s2 = inlined_call_operand.vmem [shape: f32[16,256], index: 2, kind: input, shape index: {}]
  %s3 = inlined_call_operand.vmem [shape: f32[16,16], index: 3, kind: output, shape index: {}]
  %s4 = sld [smem:[#allocation0]]
  $region22: #{weighted_tensor_product.1} parent=0
    _
  %s6 = ssub.s32 1, %s4
  %s7 = scalar_select 0, %s6, %s4
  // Predicated region
  $region2: #{weighted_tensor_product.1} parent=0 // pred_check
    _
  $region3: #{weighted_tensor_product.1} parent=0 // pred_check_branch
    %9 = sbr.rel (0) target = $region5
  $region4: #{weighted_tensor_product.1} parent=0 // pred_region
    _
  $region5: #{weighted_tensor_product.1} parent=0 // pred_fallthru
    _
  // Predicated region
  $region6: #{weighted_tensor_product.1} parent=0 // pred_check
    _
  $region7: #{weighted_tensor_product.1} parent=0 // pred_check_branch
    %11 = sbr.rel (0) target = $region9
  $region8: #{weighted_tensor_product.1} parent=0 // pred_region
    _
  $region9: #{weighted_tensor_product.1} parent=0 // pred_fallthru
    _
  // Predicated region
  $region10: #{weighted_tensor_product.1} parent=0 // pred_check
    _
  $region11: #{weighted_tensor_product.1} parent=0 // pred_check_branch
    %13 = sbr.rel (0) target = $region13
  $region12: #{weighted_tensor_product.1} parent=0 // pred_region
    _
  $region13: #{weighted_tensor_product.1} parent=0 // pred_fallthru
    _
  %v14 = vld [vmem:[%s1] sm:$0xff]
  %v15 = vld [vmem:[%s1 + $0x8] sm:$0xff]
  %v16 = vld [vmem:[%s0] sm:$0xff]
  %v18 = vrot.slane %v16, 1
  %v19 = vrot.slane %v16, 2
  %v20 = vrot.slane %v16, 3
  %v21 = vrot.slane %v16, 4
  %v22 = vrot.slane %v16, 5
  %v23 = vrot.slane %v16, 6
  %v24 = vrot.slane %v16, 7
  %v25 = vperm.slane %v16, 0
  %v26 = vperm.slane %v18, 0
  %v27 = vperm.slane %v19, 0
  %v28 = vperm.slane %v20, 0
  %v29 = vperm.slane %v21, 0
  %v30 = vperm.slane %v22, 0
  %v31 = vperm.slane %v23, 0
  %v32 = vperm.slane %v24, 0
  %v41 = vmul.f32 %v25, %v14
  %v42 = vmul.f32 %v25, %v15
  %v43 = vmul.f32 %v26, %v14
  %v44 = vmul.f32 %v26, %v15
  %v45 = vmul.f32 %v27, %v14
  %v46 = vmul.f32 %v27, %v15
  %v47 = vmul.f32 %v28, %v14
  %v48 = vmul.f32 %v28, %v15
  %v49 = vmul.f32 %v29, %v14
  %v50 = vmul.f32 %v29, %v15
  %v51 = vmul.f32 %v30, %v14
  %v52 = vmul.f32 %v30, %v15
  %v53 = vmul.f32 %v31, %v14
  %v54 = vmul.f32 %v31, %v15
  %v55 = vmul.f32 %v32, %v14
  %v56 = vmul.f32 %v32, %v15
  %v57 = vld [vmem:[%s2] sm:$0xff]
  %v58 = vld [vmem:[%s2 + $0x10] sm:$0xff]
  %v59 = vld [vmem:[%s0 + $0x8] sm:$0xff]
  %v61 = vrot.slane %v59, 1
  %v62 = vrot.slane %v59, 2
  %v63 = vrot.slane %v59, 3
  %v64 = vrot.slane %v59, 4
  %v65 = vrot.slane %v59, 5
  %v66 = vrot.slane %v59, 6
  %v67 = vrot.slane %v59, 7
  %v68 = vperm.slane %v59, 0
  %v69 = vperm.slane %v61, 0
  %v70 = vperm.slane %v62, 0
  %v71 = vperm.slane %v63, 0
  %v72 = vperm.slane %v64, 0
  %v73 = vperm.slane %v65, 0
  %v74 = vperm.slane %v66, 0
  %v75 = vperm.slane %v67, 0
  %v84 = vmul.f32 %v68, %v14
  %v85 = vmul.f32 %v68, %v15
  %v86 = vmul.f32 %v69, %v14
  %v87 = vmul.f32 %v69, %v15
  %v88 = vmul.f32 %v70, %v14
  %v89 = vmul.f32 %v70, %v15
  %v90 = vmul.f32 %v71, %v14
  %v91 = vmul.f32 %v71, %v15
  %v92 = vmul.f32 %v72, %v14
  %v93 = vmul.f32 %v72, %v15
  %v94 = vmul.f32 %v73, %v14
  %v95 = vmul.f32 %v73, %v15
  %v96 = vmul.f32 %v74, %v14
  %v97 = vmul.f32 %v74, %v15
  %v98 = vmul.f32 %v75, %v14
  %v99 = vmul.f32 %v75, %v15
  %v100 = vld [vmem:[%s2 + $0x8] sm:$0xff]
  %v101 = vld [vmem:[%s2 + $0x18] sm:$0xff]
  %102 = vmatpush.msra.mxu0 %v99
  %103 = vmatpush.msra.mxu0 %v98
  %104 = vmatpush.msra.mxu0 %v97
  %105 = vmatpush.msra.mxu0 %v96
  %106 = vmatpush.msra.mxu0 %v95
  %107 = vmatpush.msra.mxu0 %v94
  %108 = vmatpush.msra.mxu0 %v93
  %109 = vmatpush.msra.mxu0 %v92
  %110 = vmatpush.msra.mxu0 %v91
  %111 = vmatpush.msra.mxu0 %v90
  %112 = vmatpush.msra.mxu0 %v89
  %113 = vmatpush.msra.mxu0 %v88
  %114 = vmatpush.msra.mxu0 %v87
  %115 = vmatpush.msra.mxu0 %v86
  %116 = vmatpush.msra.mxu0 %v85
  %117 = vmatpush.msra.mxu0 %v84
  %118 = vmatmul.f32.gmra.mxu0 %v100
  %v119 = vpop.f32.mrf.mxu0
  %v120 = vadd.f32 0.0, %v119
  %121 = vmatmul.f32.gmra.mxu0 %v101
  %v122 = vpop.f32.mrf.mxu0
  %v123 = vadd.f32 0.0, %v122
  %124 = vdwg.mxu0
  %125 = vmatpush.msra.mxu0 %v56
  %126 = vmatpush.msra.mxu0 %v55
  %127 = vmatpush.msra.mxu0 %v54
  %128 = vmatpush.msra.mxu0 %v53
  %129 = vmatpush.msra.mxu0 %v52
  %130 = vmatpush.msra.mxu0 %v51
  %131 = vmatpush.msra.mxu0 %v50
  %132 = vmatpush.msra.mxu0 %v49
  %133 = vmatpush.msra.mxu0 %v48
  %134 = vmatpush.msra.mxu0 %v47
  %135 = vmatpush.msra.mxu0 %v46
  %136 = vmatpush.msra.mxu0 %v45
  %137 = vmatpush.msra.mxu0 %v44
  %138 = vmatpush.msra.mxu0 %v43
  %139 = vmatpush.msra.mxu0 %v42
  %140 = vmatpush.msra.mxu0 %v41
  %141 = vmatmul.f32.gmra.mxu0 %v57
  %v142 = vpop.f32.mrf.mxu0
  %v143 = vadd.f32 %v120, %v142
  %144 = vmatmul.f32.gmra.mxu0 %v58
  %v145 = vpop.f32.mrf.mxu0
  %v146 = vadd.f32 %v123, %v145
  %147 = vdwg.mxu0
  %vm148 = vcmask 130048
  %149 = vst.msk [vmem:[%s3] sm:$0xff] %vm148, %v143
  %150 = vst.msk [vmem:[%s3 + $0x8] sm:$0xff] %vm148, %v146
  // Predicated region
  $region14: #{weighted_tensor_product.1} parent=0 // pred_check
    _
  $region15: #{weighted_tensor_product.1} parent=0 // pred_check_branch
    %152 = sbr.rel (0) target = $region17
  $region16: #{weighted_tensor_product.1} parent=0 // pred_region
    _
  $region17: #{weighted_tensor_product.1} parent=0 // pred_fallthru
    _
  // Predicated region
  $region18: #{weighted_tensor_product.1} parent=0 // pred_check
    _
  $region19: #{weighted_tensor_product.1} parent=0 // pred_check_branch
    %154 = sbr.rel (0) target = $region21
  $region20: #{weighted_tensor_product.1} parent=0 // pred_region
    _
  $region21: #{weighted_tensor_product.1} parent=0 // pred_fallthru
    _

</llo_original>
